<compile_context>
chip_gen: v6e
topology: v6e:2x2x1
jax: 0.10.0
libtpu: 0.0.40
codegen_flags: <defaults>
</compile_context>

<pallas_src>
import functools

import jax
import jax.numpy as jnp
from jax.experimental import pallas as pl
from jax.experimental.pallas import tpu as pltpu


def _round_up(a, m):
    return ((a + m - 1) // m) * m


def residual_block_kernel(x_ref, w1_ref, b1_ref, w2_ref, b2_ref, o_ref):
    """Fused: linear1 + bias + relu + linear2 + bias + residual + relu on one tile."""
    x = x_ref[...]                                    # (tbp, feat), input dtype
    x_res = x.astype(jnp.float32)                     # f32 copy for the residual path

    # linear1 (+ bias, relu) -- MXU matmul, f32 accumulation.  The cast to the
    # weight dtype is a no-op when weights are f32, bf16 otherwise.
    h = jnp.dot(x.astype(w1_ref.dtype), w1_ref[...],
                preferred_element_type=jnp.float32)
    h = jnp.maximum(h + b1_ref[...], 0.0)             # f32 elementwise (all TPU gens)

    # linear2 -- feed the MXU its narrow dtype again if the weights are narrow.
    y = jnp.dot(h.astype(w2_ref.dtype), w2_ref[...],
                preferred_element_type=jnp.float32)
    y = y + b2_ref[...]

    # residual add + relu, lane-dense store.
    o_ref[...] = jnp.maximum(y + x_res, 0.0).astype(o_ref.dtype)


def pack_weights(w1, b1, w2, b2, *, mxu_dtype=None):
    """Pre-pack weights once (call OUTSIDE the per-step path / jit).

    Weights are stored [in, out] (transpose of torch.nn.Linear.weight), so the
    kernel computes x @ W + b, matching PyTorch's x @ W_pt.T + b.

    When dim_stack divides 128, `pack` consecutive batch rows are folded into
    one 128-lane row; the weights become block-diagonal so results are
    bit-identical to the unpacked math (zero blocks contribute nothing).
    """
    dim_stack, hidden = w1.shape
    b1 = b1.reshape(1, hidden)
    b2 = b2.reshape(1, dim_stack)

    pack = 128 // dim_stack if (dim_stack < 128 and 128 % dim_stack == 0) else 1
    if pack > 1:
        w1p = jax.scipy.linalg.block_diag(*([w1] * pack))   # (pack*ds, pack*hidden)
        b1p = jnp.tile(b1, (1, pack))                       # (1, pack*hidden)
        w2p = jax.scipy.linalg.block_diag(*([w2] * pack))   # (pack*hidden, pack*ds)
        b2p = jnp.tile(b2, (1, pack))                       # (1, pack*ds)
    else:
        w1p, b1p, w2p, b2p = w1, b1, w2, b2

    if mxu_dtype is not None:
        # Narrow dtype only at the MXU boundary; biases / elementwise stay f32.
        w1p = w1p.astype(mxu_dtype)
        w2p = w2p.astype(mxu_dtype)
    return w1p, b1p, w2p, b2p, pack


def residual_block(x, w1p, b1p, w2p, b2p, *, pack=1, tb=1024):
    """x: (B, dim_stack); packed weights from `pack_weights`."""
    B, dim_stack = x.shape
    out_dtype = x.dtype

    # Batch-tile alignment: sublane packing of the x tile times the lane pack.
    sub = 8 if jnp.dtype(x.dtype).itemsize == 4 else 16
    row_align = sub * pack

    # Big batch tile to amortize per-grid-step overhead, clamped to the batch.
    tb = max(row_align, _round_up(min(tb, B), row_align))
    B_pad = _round_up(B, tb)
    if B_pad != B:
        x = jnp.pad(x, ((0, B_pad - B), (0, 0)))

    # Fold `pack` consecutive rows into one lane-dense row (free HBM reshape).
    x_in = x.reshape(B_pad // pack, dim_stack * pack) if pack > 1 else x

    rows, feat = x_in.shape              # feat == 128 when packed
    hid = w1p.shape[1]
    tbp = tb // pack                     # packed rows per batch tile
    grid = (rows // tbp,)

    itemsize = jnp.dtype(x_in.dtype).itemsize
    w_itemsize = jnp.dtype(w1p.dtype).itemsize
    cost = pl.CostEstimate(
        flops=4 * rows * feat * hid,     # two matmuls
        transcendentals=0,
        bytes_accessed=2 * rows * feat * itemsize
        + (w1p.size + w2p.size) * w_itemsize
        + (b1p.size + b2p.size) * 4,
    )

    out = pl.pallas_call(
        residual_block_kernel,
        out_shape=jax.ShapeDtypeStruct((rows, feat), out_dtype),
        grid_spec=pltpu.PrefetchScalarGridSpec(
            num_scalar_prefetch=0,
            grid=grid,
            in_specs=[
                pl.BlockSpec((tbp, feat), lambda i: (i, 0)),   # x tile (lane-dense)
                pl.BlockSpec((feat, hid), lambda i: (0, 0)),   # w1 (VMEM-resident)
                pl.BlockSpec((1, hid), lambda i: (0, 0)),      # b1
                pl.BlockSpec((hid, feat), lambda i: (0, 0)),   # w2 (VMEM-resident)
                pl.BlockSpec((1, feat), lambda i: (0, 0)),     # b2
            ],
            out_specs=pl.BlockSpec((tbp, feat), lambda i: (i, 0)),
        ),
        compiler_params=pltpu.CompilerParams(
            dimension_semantics=("parallel",),        # v7x: shard steps over 2 TCs
            vmem_limit_bytes=32 * 1024 * 1024,        # explicit; fits v5e/v6e/v7x
        ),
        cost_estimate=cost,
    )(x_in, w1p, b1p, w2p, b2p)

    out = out.reshape(B_pad, dim_stack)
    return out[:B] if B_pad != B else out


def reference(x, w1, b1, w2, b2):
    h = jnp.maximum(x @ w1 + b1.reshape(1, -1), 0.0)
    y = h @ w2 + b2.reshape(1, -1)
    return jnp.maximum(y + x, 0.0)


def xavier_normal(key, fan_in, fan_out):
    # matches torch.nn.init.xavier_normal_ std = sqrt(2 / (fan_in + fan_out))
    std = (2.0 / (fan_in + fan_out)) ** 0.5
    return std * jax.random.normal(key, (fan_in, fan_out), dtype=jnp.float32)


if __name__ == "__main__":
    # Small shapes consistent with the module: dim_stack = stacked embedding dim,
    # hidden_unit = residual hidden width.
    batch, dim_stack, hidden_unit = 16, 32, 64

    key = jax.random.PRNGKey(0)
    kx, kw1, kb1, kw2, kb2 = jax.random.split(key, 5)

    x = jax.random.normal(kx, (batch, dim_stack), dtype=jnp.float32)
    w1 = xavier_normal(kw1, dim_stack, hidden_unit)        # (in, out) = linear1.weight.T
    b1 = 0.01 * jax.random.normal(kb1, (1, hidden_unit), dtype=jnp.float32)
    w2 = xavier_normal(kw2, hidden_unit, dim_stack)        # (in, out) = linear2.weight.T
    b2 = 0.01 * jax.random.normal(kb2, (1, dim_stack), dtype=jnp.float32)

    ref = reference(x, w1, b1, w2, b2)

    # f32-at-the-MXU path: matches the reference at tight tolerance.
    w1p, b1p, w2p, b2p, pack = pack_weights(w1, b1, w2, b2)            # packed once
    run_f32 = jax.jit(functools.partial(residual_block, pack=pack, tb=1024))
    out = jax.block_until_ready(run_f32(x, w1p, b1p, w2p, b2p))
    assert out.shape == (batch, dim_stack)
    assert jnp.allclose(out, ref, atol=1e-5, rtol=1e-5), "f32 path mismatch vs reference"

    # bf16-at-the-MXU path (f32 accumulation + f32 elementwise): looser tolerance.
    w1b, b1b, w2b, b2b, pack_b = pack_weights(w1, b1, w2, b2, mxu_dtype=jnp.bfloat16)
    run_bf16 = jax.jit(functools.partial(residual_block, pack=pack_b, tb=1024))
    out_bf = jax.block_until_ready(run_bf16(x, w1b, b1b, w2b, b2b))
    assert out_bf.shape == (batch, dim_stack)
    assert jnp.allclose(out_bf, ref, atol=8e-2, rtol=8e-2), "bf16 MXU path mismatch"

    print("KERNEL_OK")
</pallas_src>

<mosaic_0001>
module attributes {stable_mosaic.version = 11 : i64} {
  func.func @residual_block_kernel(%arg0: i32, %arg1: memref<8x128xf32, #tpu.memory_space<vmem>>, %arg2: memref<128x256xf32, #tpu.memory_space<vmem>>, %arg3: memref<1x256xf32, #tpu.memory_space<vmem>>, %arg4: memref<256x128xf32, #tpu.memory_space<vmem>>, %arg5: memref<1x128xf32, #tpu.memory_space<vmem>>, %arg6: memref<8x128xf32, #tpu.memory_space<vmem>>) attributes {dimension_semantics = [#tpu.dimension_semantics<parallel>], iteration_bounds = array<i64: 1>, scalar_prefetch = 0 : i64, scratch_operands = 0 : i64, tpu.core_type = #tpu.core_type<tc>, window_params = [{transform_indices = @transform_0, window_bounds = array<i64: 8, 128>}, {pipeline_mode = #tpu.pipeline_mode<synchronous>, transform_indices = @transform_1, window_bounds = array<i64: 128, 256>}, {pipeline_mode = #tpu.pipeline_mode<synchronous>, transform_indices = @transform_2, window_bounds = array<i64: 1, 256>}, {pipeline_mode = #tpu.pipeline_mode<synchronous>, transform_indices = @transform_3, window_bounds = array<i64: 256, 128>}, {pipeline_mode = #tpu.pipeline_mode<synchronous>, transform_indices = @transform_4, window_bounds = array<i64: 1, 128>}, {transform_indices = @transform_5, window_bounds = array<i64: 8, 128>}]} {
    %c0 = arith.constant 0 : index
    %c0_0 = arith.constant 0 : index
    %0 = vector.load %arg1[%c0, %c0_0] : memref<8x128xf32, #tpu.memory_space<vmem>>, vector<8x128xf32>
    %c0_1 = arith.constant 0 : index
    %c0_2 = arith.constant 0 : index
    %1 = vector.load %arg2[%c0_1, %c0_2] : memref<128x256xf32, #tpu.memory_space<vmem>>, vector<128x256xf32>
    %cst = arith.constant dense<0.000000e+00> : vector<8x256xf32>
    %2 = tpu.matmul %0, %1, %cst {dimension_numbers = #tpu.dot_dimension_numbers<[1], [0], [0], [1], [0, 0, 1, 1], [], []>} : vector<8x128xf32>, vector<128x256xf32>, vector<8x256xf32> -> vector<8x256xf32>
    %c0_3 = arith.constant 0 : index
    %c0_4 = arith.constant 0 : index
    %3 = vector.load %arg3[%c0_3, %c0_4] : memref<1x256xf32, #tpu.memory_space<vmem>>, vector<1x256xf32>
    %4 = vector.broadcast %3 : vector<1x256xf32> to vector<8x256xf32>
    %5 = arith.addf %2, %4 : vector<8x256xf32>
    %cst_5 = arith.constant 0.000000e+00 : f32
    %6 = vector.broadcast %cst_5 : f32 to vector<8x256xf32>
    %7 = arith.maximumf %5, %6 : vector<8x256xf32>
    %c0_6 = arith.constant 0 : index
    %c0_7 = arith.constant 0 : index
    %8 = vector.load %arg4[%c0_6, %c0_7] : memref<256x128xf32, #tpu.memory_space<vmem>>, vector<256x128xf32>
    %cst_8 = arith.constant dense<0.000000e+00> : vector<8x128xf32>
    %9 = tpu.matmul %7, %8, %cst_8 {dimension_numbers = #tpu.dot_dimension_numbers<[1], [0], [0], [1], [0, 0, 1, 1], [], []>} : vector<8x256xf32>, vector<256x128xf32>, vector<8x128xf32> -> vector<8x128xf32>
    %c0_9 = arith.constant 0 : index
    %c0_10 = arith.constant 0 : index
    %10 = vector.load %arg5[%c0_9, %c0_10] : memref<1x128xf32, #tpu.memory_space<vmem>>, vector<1x128xf32>
    %11 = vector.broadcast %10 : vector<1x128xf32> to vector<8x128xf32>
    %12 = arith.addf %9, %11 : vector<8x128xf32>
    %13 = arith.addf %12, %0 : vector<8x128xf32>
    %cst_11 = arith.constant 0.000000e+00 : f32
    %14 = vector.broadcast %cst_11 : f32 to vector<8x128xf32>
    %15 = arith.maximumf %13, %14 : vector<8x128xf32>
    %c0_12 = arith.constant 0 : index
    %c0_13 = arith.constant 0 : index
    %16 = vector.load %arg6[%c0_12, %c0_13] : memref<8x128xf32, #tpu.memory_space<vmem>>, vector<8x128xf32>
    tpu.vector_store %arg6[%c0_12, %c0_13], %15 {strides = array<i32>} : memref<8x128xf32, #tpu.memory_space<vmem>>, vector<8x128xf32>,
    return
  }
  func.func @transform_0(%arg0: i32) -> (i32, i32) {
    %c0_i32 = arith.constant 0 : i32
    %c0_i32_0 = arith.constant 0 : i32
    return %arg0, %c0_i32 : i32, i32
  }
  func.func @transform_1(%arg0: i32) -> (i32, i32) {
    %c0_i32 = arith.constant 0 : i32
    %c0_i32_0 = arith.constant 0 : i32
    %c0_i32_1 = arith.constant 0 : i32
    return %c0_i32, %c0_i32_0 : i32, i32
  }
  func.func @transform_2(%arg0: i32) -> (i32, i32) {
    %c0_i32 = arith.constant 0 : i32
    %c0_i32_0 = arith.constant 0 : i32
    %c0_i32_1 = arith.constant 0 : i32
    return %c0_i32, %c0_i32_0 : i32, i32
  }
  func.func @transform_3(%arg0: i32) -> (i32, i32) {
    %c0_i32 = arith.constant 0 : i32
    %c0_i32_0 = arith.constant 0 : i32
    %c0_i32_1 = arith.constant 0 : i32
    return %c0_i32, %c0_i32_0 : i32, i32
  }
  func.func @transform_4(%arg0: i32) -> (i32, i32) {
    %c0_i32 = arith.constant 0 : i32
    %c0_i32_0 = arith.constant 0 : i32
    %c0_i32_1 = arith.constant 0 : i32
    return %c0_i32, %c0_i32_0 : i32, i32
  }
  func.func @transform_5(%arg0: i32) -> (i32, i32) {
    %c0_i32 = arith.constant 0 : i32
    %c0_i32_0 = arith.constant 0 : i32
    return %arg0, %c0_i32 : i32, i32
  }
}

</mosaic_0001>

<llo_original>
// kernel: residual_block.1
$region0: #{residual_block.1}
  #allocation0 [shape = 'u32[]', space=smem, size = 0x4, offset = 0x4, fixed_abs, tag = 'smem constant byte address 0x4 - core index']
  #allocation1 [shape = 'u32[144,128]{1,0:T(1,128)}', space=vmem, size = 0x12000, scoped, tag = 'internal scratch']
  %s0 = inlined_call_operand.vmem [shape: f32[8,128], index: 0, kind: input, shape index: {}]
  %s1 = inlined_call_operand.hbm [shape: f32[128,256], index: 1, kind: input, shape index: {}]
  %s2 = inlined_call_operand.vmem [shape: f32[1,256], index: 2, kind: input, shape index: {}]
  %s3 = inlined_call_operand.hbm [shape: f32[256,128], index: 3, kind: input, shape index: {}]
  %s4 = inlined_call_operand.vmem [shape: f32[1,128], index: 4, kind: input, shape index: {}]
  %s5 = inlined_call_operand.vmem [shape: f32[8,128], index: 5, kind: output, shape index: {}]
  %s6 = sld [smem:[#allocation0]]
  $region38: #{residual_block.1} parent=0
    _
  %s8 = ssub.s32 1, %s6
  %s9 = scalar_select 0, %s8, %s6
  $region1: #{residual_block.1} parent=0
    #allocation2 [shape = 'u8[131072]{0}', space=vmem, size = 0x20000, scoped, tag = 'input window, operand 1, single buffered']
    #allocation3 [shape = 's32[1]{0}', space=sflag, size = 0x4, scoped, tag = 'scoped memory for residual_block.1']
    #allocation4 [shape = 'u8[131072]{0}', space=vmem, size = 0x20000, scoped, tag = 'input window, operand 3, single buffered']
    #allocation5 [shape = 's32[1]{0}', space=sflag, size = 0x4, scoped, tag = 'scoped memory for residual_block.1']
    %10 = vsyncpa [#allocation3], 0
    %11 = vsyncpa [#allocation5], 0
    // Predicated region
    $region2: #{residual_block.1} parent=1 // pred_check
      _
    $region3: #{residual_block.1} parent=1 // pred_check_branch
      %13 = sbr.rel (0) target = $region5
    $region4: #{residual_block.1} parent=1 // pred_region
      _
    $region5: #{residual_block.1} parent=1 // pred_fallthru
      _
    // Predicated region
    $region6: #{residual_block.1} parent=1 // pred_check
      _
    $region7: #{residual_block.1} parent=1 // pred_check_branch
      %15 = sbr.rel (0) target = $region9
    $region8: #{residual_block.1} parent=1 // pred_region
      %s17 = ssub.s32 4096, 4096
      %18 = vsyncadd [#allocation3], %s17
      %s19 = sshll.u32 [#allocation2], 4
      %s20 = int_to_ptr.vmem [resolvable:$true] %s19
      %25 = dma.hbm_to_vmem [thread:$0]  %s1, 4096, %s20, [#allocation3], 256, 256, 16
    $region9: #{residual_block.1} parent=1 // pred_fallthru
      _
    // Predicated region
    $region10: #{residual_block.1} parent=1 // pred_check
      _
    $region11: #{residual_block.1} parent=1 // pred_check_branch
      %27 = sbr.rel (0) target = $region13
    $region12: #{residual_block.1} parent=1 // pred_region
      _
    $region13: #{residual_block.1} parent=1 // pred_fallthru
      _
    // Predicated region
    $region14: #{residual_block.1} parent=1 // pred_check
      _
    $region15: #{residual_block.1} parent=1 // pred_check_branch
      %29 = sbr.rel (0) target = $region17
    $region16: #{residual_block.1} parent=1 // pred_region
      %s31 = ssub.s32 4096, 4096
      %32 = vsyncadd [#allocation5], %s31
      %s33 = sshll.u32 [#allocation4], 4
      %s34 = int_to_ptr.vmem [resolvable:$true] %s33
      %39 = dma.hbm_to_vmem [thread:$0]  %s3, 4096, %s34, [#allocation5], 128, 128, 8
    $region17: #{residual_block.1} parent=1 // pred_fallthru
      _
    // Predicated region
    $region18: #{residual_block.1} parent=1 // pred_check
      _
    $region19: #{residual_block.1} parent=1 // pred_check_branch
      %41 = sbr.rel (0) target = $region21
    $region20: #{residual_block.1} parent=1 // pred_region
      _
    $region21: #{residual_block.1} parent=1 // pred_fallthru
      _
    // Predicated region
    $region22: #{residual_block.1} parent=1 // pred_check
      _
    $region23: #{residual_block.1} parent=1 // pred_check_branch
      %43 = sbr.rel (0) target = $region25
    $region24: #{residual_block.1} parent=1 // pred_region
      %44 = dma.done [#allocation3], 4096
    $region25: #{residual_block.1} parent=1 // pred_fallthru
      _
    // Predicated region
    $region26: #{residual_block.1} parent=1 // pred_check
      _
    $region27: #{residual_block.1} parent=1 // pred_check_branch
      %46 = sbr.rel (0) target = $region29
    $region28: #{residual_block.1} parent=1 // pred_region
      %47 = dma.done [#allocation5], 4096
    $region29: #{residual_block.1} parent=1 // pred_fallthru
      _
    %v48 = vld [vmem:[%s0] sm:$0xff]
    %v49 = vld [vmem:[#allocation2] sm:$0xff]
    %v50 = vld [vmem:[#allocation2 + $0x8] sm:$0xff]
    %v51 = vld [vmem:[#allocation2 + $0x10] sm:$0xff]
    %v52 = vld [vmem:[#allocation2 + $0x18] sm:$0xff]
    %v53 = vld [vmem:[#allocation2 + $0x20] sm:$0xff]
    %v54 = vld [vmem:[#allocation2 + $0x28] sm:$0xff]
    %v55 = vld [vmem:[#allocation2 + $0x30] sm:$0xff]
    %v56 = vld [vmem:[#allocation2 + $0x38] sm:$0xff]
    %v57 = vld [vmem:[#allocation2 + $0x40] sm:$0xff]
    %v58 = vld [vmem:[#allocation2 + $0x48] sm:$0xff]
    %v59 = vld [vmem:[#allocation2 + $0x50] sm:$0xff]
    %v60 = vld [vmem:[#allocation2 + $0x58] sm:$0xff]
    %v61 = vld [vmem:[#allocation2 + $0x60] sm:$0xff]
    %v62 = vld [vmem:[#allocation2 + $0x68] sm:$0xff]
    %v63 = vld [vmem:[#allocation2 + $0x70] sm:$0xff]
    %v64 = vld [vmem:[#allocation2 + $0x78] sm:$0xff]
    %v65 = vld [vmem:[#allocation2 + $0x80] sm:$0xff]
    %v66 = vld [vmem:[#allocation2 + $0x88] sm:$0xff]
    %v67 = vld [vmem:[#allocation2 + $0x90] sm:$0xff]
    %v68 = vld [vmem:[#allocation2 + $0x98] sm:$0xff]
    %v69 = vld [vmem:[#allocation2 + $0xa0] sm:$0xff]
    %v70 = vld [vmem:[#allocation2 + $0xa8] sm:$0xff]
    %v71 = vld [vmem:[#allocation2 + $0xb0] sm:$0xff]
    %v72 = vld [vmem:[#allocation2 + $0xb8] sm:$0xff]
    %v73 = vld [vmem:[#allocation2 + $0xc0] sm:$0xff]
    %v74 = vld [vmem:[#allocation2 + $0xc8] sm:$0xff]
    %v75 = vld [vmem:[#allocation2 + $0xd0] sm:$0xff]
    %v76 = vld [vmem:[#allocation2 + $0xd8] sm:$0xff]
    %v77 = vld [vmem:[#allocation2 + $0xe0] sm:$0xff]
    %v78 = vld [vmem:[#allocation2 + $0xe8] sm:$0xff]
    %v79 = vld [vmem:[#allocation2 + $0xf0] sm:$0xff]
    %v80 = vld [vmem:[#allocation2 + $0xf8] sm:$0xff]
    %v81 = vld [vmem:[%s2] sm:$0x3]
    %v83 = vlaneseq
    %v84 = vshrl.u32 %v83, 7
    %v85 = vsub.s32 0, %v84
    %v86 = vrot.slane %v81, %v85
    %v87 = vlaneseq
    %v88 = vshrl.u32 %v87, 7
    %v89 = vsub.s32 1, %v88
    %v90 = vrot.slane %v81, %v89
    %93 = vmatprep.subr.mxu0 %v80
    %94 = vmatpush1.msra.mxu0 %v79
    %95 = vmatprep.subr.mxu0 %v78
    %96 = vmatpush1.msra.mxu0 %v77
    %97 = vmatprep.subr.mxu0 %v76
    %98 = vmatpush1.msra.mxu0 %v75
    %99 = vmatprep.subr.mxu0 %v74
    %100 = vmatpush1.msra.mxu0 %v73
    %101 = vmatprep.subr.mxu0 %v72
    %102 = vmatpush1.msra.mxu0 %v71
    %103 = vmatprep.subr.mxu0 %v70
    %104 = vmatpush1.msra.mxu0 %v69
    %105 = vmatprep.subr.mxu0 %v68
    %106 = vmatpush1.msra.mxu0 %v67
    %107 = vmatprep.subr.mxu0 %v66
    %108 = vmatpush1.msra.mxu0 %v65
    %109 = vmatprep.subr.mxu0 %v64
    %110 = vmatpush1.msra.mxu0 %v63
    %111 = vmatprep.subr.mxu0 %v62
    %112 = vmatpush1.msra.mxu0 %v61
    %113 = vmatprep.subr.mxu0 %v60
    %114 = vmatpush1.msra.mxu0 %v59
    %115 = vmatprep.subr.mxu0 %v58
    %116 = vmatpush1.msra.mxu0 %v57
    %117 = vmatprep.subr.mxu0 %v56
    %118 = vmatpush1.msra.mxu0 %v55
    %119 = vmatprep.subr.mxu0 %v54
    %120 = vmatpush1.msra.mxu0 %v53
    %121 = vmatprep.subr.mxu0 %v52
    %122 = vmatpush1.msra.mxu0 %v51
    %123 = vmatprep.subr.mxu0 %v50
    %124 = vmatpush1.msra.mxu0 %v49
    %125 = vmatprep.subr.mxu0 0.0
    %126 = vmatpush2.msra.mxu0 0.0
    %127 = vmatprep.subr.mxu0 0.0
    %128 = vmatpush2.msra.mxu0 0.0
    %129 = vmatprep.subr.mxu0 0.0
    %130 = vmatpush2.msra.mxu0 0.0
    %131 = vmatprep.subr.mxu0 0.0
    %132 = vmatpush2.msra.mxu0 0.0
    %133 = vmatprep.subr.mxu0 0.0
    %134 = vmatpush2.msra.mxu0 0.0
    %135 = vmatprep.subr.mxu0 0.0
    %136 = vmatpush2.msra.mxu0 0.0
    %137 = vmatprep.subr.mxu0 0.0
    %138 = vmatpush2.msra.mxu0 0.0
    %139 = vmatprep.subr.mxu0 0.0
    %140 = vmatpush2.msra.mxu0 0.0
    %141 = vmatprep.subr.mxu0 0.0
    %142 = vmatpush2.msra.mxu0 0.0
    %143 = vmatprep.subr.mxu0 0.0
    %144 = vmatpush2.msra.mxu0 0.0
    %145 = vmatprep.subr.mxu0 0.0
    %146 = vmatpush2.msra.mxu0 0.0
    %147 = vmatprep.subr.mxu0 0.0
    %148 = vmatpush2.msra.mxu0 0.0
    %149 = vmatprep.subr.mxu0 0.0
    %150 = vmatpush2.msra.mxu0 0.0
    %151 = vmatprep.subr.mxu0 0.0
    %152 = vmatpush2.msra.mxu0 0.0
    %153 = vmatprep.subr.mxu0 0.0
    %154 = vmatpush2.msra.mxu0 0.0
    %155 = vmatprep.subr.mxu0 0.0
    %156 = vmatpush2.msra.mxu0 0.0
    %157 = vmatprep.mubr.f32.mxu0 0.0
    %158 = vmatmul.mubr.f32.gmra.mxu0 %v48
    %v159 = vpop.f32.mrf.mxu0
    %v160 = vadd.f32 %v86, %v159
    %v161 = vpop.f32.mrf.mxu0
    %v162 = vadd.f32 %v90, %v161
    %163 = vdwg.mxu0
    %v164 = vmax.f32 %v160, 0.0
    %v165 = vmax.f32 %v162, 0.0
    %v166 = vld [vmem:[#allocation4] sm:$0xff]
    %v167 = vld [vmem:[#allocation4 + $0x8] sm:$0xff]
    %v168 = vld [vmem:[#allocation4 + $0x10] sm:$0xff]
    %v169 = vld [vmem:[#allocation4 + $0x18] sm:$0xff]
    %v170 = vld [vmem:[#allocation4 + $0x20] sm:$0xff]
    %v171 = vld [vmem:[#allocation4 + $0x28] sm:$0xff]
    %v172 = vld [vmem:[#allocation4 + $0x30] sm:$0xff]
    %v173 = vld [vmem:[#allocation4 + $0x38] sm:$0xff]
    %v174 = vld [vmem:[#allocation4 + $0x40] sm:$0xff]
    %v175 = vld [vmem:[#allocation4 + $0x48] sm:$0xff]
    %v176 = vld [vmem:[#allocation4 + $0x50] sm:$0xff]
    %v177 = vld [vmem:[#allocation4 + $0x58] sm:$0xff]
    %v178 = vld [vmem:[#allocation4 + $0x60] sm:$0xff]
    %v179 = vld [vmem:[#allocation4 + $0x68] sm:$0xff]
    %v180 = vld [vmem:[#allocation4 + $0x70] sm:$0xff]
    %v181 = vld [vmem:[#allocation4 + $0x78] sm:$0xff]
    %v182 = vld [vmem:[#allocation4 + $0x80] sm:$0xff]
    %v183 = vld [vmem:[#allocation4 + $0x88] sm:$0xff]
    %v184 = vld [vmem:[#allocation4 + $0x90] sm:$0xff]
    %v185 = vld [vmem:[#allocation4 + $0x98] sm:$0xff]
    %v186 = vld [vmem:[#allocation4 + $0xa0] sm:$0xff]
    %v187 = vld [vmem:[#allocation4 + $0xa8] sm:$0xff]
    %v188 = vld [vmem:[#allocation4 + $0xb0] sm:$0xff]
    %v189 = vld [vmem:[#allocation4 + $0xb8] sm:$0xff]
    %v190 = vld [vmem:[#allocation4 + $0xc0] sm:$0xff]
    %v191 = vld [vmem:[#allocation4 + $0xc8] sm:$0xff]
    %v192 = vld [vmem:[#allocation4 + $0xd0] sm:$0xff]
    %v193 = vld [vmem:[#allocation4 + $0xd8] sm:$0xff]
    %v194 = vld [vmem:[#allocation4 + $0xe0] sm:$0xff]
    %v195 = vld [vmem:[#allocation4 + $0xe8] sm:$0xff]
    %v196 = vld [vmem:[#allocation4 + $0xf0] sm:$0xff]
    %v197 = vld [vmem:[#allocation4 + $0xf8] sm:$0xff]
    %v198 = vld [vmem:[%s4] sm:$0x1]
    %v200 = vlaneseq
    %v201 = vshrl.u32 %v200, 7
    %v202 = vsub.s32 0, %v201
    %v203 = vrot.slane %v198, %v202
    %205 = vmatprep.subr.mxu0 0.0
    %206 = vmatpush1.msra.mxu0 %v181
    %207 = vmatprep.subr.mxu0 0.0
    %208 = vmatpush1.msra.mxu0 %v180
    %209 = vmatprep.subr.mxu0 0.0
    %210 = vmatpush1.msra.mxu0 %v179
    %211 = vmatprep.subr.mxu0 0.0
    %212 = vmatpush1.msra.mxu0 %v178
    %213 = vmatprep.subr.mxu0 0.0
    %214 = vmatpush1.msra.mxu0 %v177
    %215 = vmatprep.subr.mxu0 0.0
    %216 = vmatpush1.msra.mxu0 %v176
    %217 = vmatprep.subr.mxu0 0.0
    %218 = vmatpush1.msra.mxu0 %v175
    %219 = vmatprep.subr.mxu0 0.0
    %220 = vmatpush1.msra.mxu0 %v174
    %221 = vmatprep.subr.mxu0 0.0
    %222 = vmatpush1.msra.mxu0 %v173
    %223 = vmatprep.subr.mxu0 0.0
    %224 = vmatpush1.msra.mxu0 %v172
    %225 = vmatprep.subr.mxu0 0.0
    %226 = vmatpush1.msra.mxu0 %v171
    %227 = vmatprep.subr.mxu0 0.0
    %228 = vmatpush1.msra.mxu0 %v170
    %229 = vmatprep.subr.mxu0 0.0
    %230 = vmatpush1.msra.mxu0 %v169
    %231 = vmatprep.subr.mxu0 0.0
    %232 = vmatpush1.msra.mxu0 %v168
    %233 = vmatprep.subr.mxu0 0.0
    %234 = vmatpush1.msra.mxu0 %v167
    %235 = vmatprep.subr.mxu0 0.0
    %236 = vmatpush1.msra.mxu0 %v166
    %237 = vmatprep.subr.mxu0 0.0
    %238 = vmatpush2.msra.mxu0 %v197
    %239 = vmatprep.subr.mxu0 0.0
    %240 = vmatpush2.msra.mxu0 %v196
    %241 = vmatprep.subr.mxu0 0.0
    %242 = vmatpush2.msra.mxu0 %v195
    %243 = vmatprep.subr.mxu0 0.0
    %244 = vmatpush2.msra.mxu0 %v194
    %245 = vmatprep.subr.mxu0 0.0
    %246 = vmatpush2.msra.mxu0 %v193
    %247 = vmatprep.subr.mxu0 0.0
    %248 = vmatpush2.msra.mxu0 %v192
    %249 = vmatprep.subr.mxu0 0.0
    %250 = vmatpush2.msra.mxu0 %v191
    %251 = vmatprep.subr.mxu0 0.0
    %252 = vmatpush2.msra.mxu0 %v190
    %253 = vmatprep.subr.mxu0 0.0
    %254 = vmatpush2.msra.mxu0 %v189
    %255 = vmatprep.subr.mxu0 0.0
    %256 = vmatpush2.msra.mxu0 %v188
    %257 = vmatprep.subr.mxu0 0.0
    %258 = vmatpush2.msra.mxu0 %v187
    %259 = vmatprep.subr.mxu0 0.0
    %260 = vmatpush2.msra.mxu0 %v186
    %261 = vmatprep.subr.mxu0 0.0
    %262 = vmatpush2.msra.mxu0 %v185
    %263 = vmatprep.subr.mxu0 0.0
    %264 = vmatpush2.msra.mxu0 %v184
    %265 = vmatprep.subr.mxu0 0.0
    %266 = vmatpush2.msra.mxu0 %v183
    %267 = vmatprep.subr.mxu0 0.0
    %268 = vmatpush2.msra.mxu0 %v182
    %269 = vmatprep.mubr.f32.mxu0 %v165
    %270 = vmatmul.mubr.f32.gmra.mxu0 %v164
    %v271 = vpop.f32.mrf.mxu0
    %v272 = vadd.f32 %v203, %v271
    %v273 = vpop.f32.mrf.mxu0
    %274 = vdwg.mxu0
    %v275 = vadd.f32 %v272, %v48
    %v276 = vmax.f32 %v275, 0.0
    %277 = vst [vmem:[%s5] sm:$0xff] %v276
    // Predicated region
    $region30: #{residual_block.1} parent=1 // pred_check
      _
    $region31: #{residual_block.1} parent=1 // pred_check_branch
      %279 = sbr.rel (0) target = $region33
    $region32: #{residual_block.1} parent=1 // pred_region
      _
    $region33: #{residual_block.1} parent=1 // pred_fallthru
      _
    // Predicated region
    $region34: #{residual_block.1} parent=1 // pred_check
      _
    $region35: #{residual_block.1} parent=1 // pred_check_branch
      %281 = sbr.rel (0) target = $region37
    $region36: #{residual_block.1} parent=1 // pred_region
      _
    $region37: #{residual_block.1} parent=1 // pred_fallthru
      _
    %282 = vsyncpa [#allocation3], 1
    %283 = vsyncpa [#allocation5], 1

</llo_original>
